<compile_context>
chip_gen: v7x
topology: tpu7x:2x2x1
jax: 0.10.0
libtpu: 0.0.40
codegen_flags: <defaults>
</compile_context>

<pallas_src>
import functools

import jax
import jax.numpy as jnp
from jax import lax
from jax.experimental import pallas as pl
from jax.experimental.pallas import tpu as pltpu


def _taps(k):
    p = (k - 1) // 2
    return [(dh, dw) for dh in range(-p, p + 1) for dw in range(-p, p + 1)]


TAPS25 = _taps(5)   # raster order, index t = (dh+2)*5 + (dw+2)
TAPS9 = _taps(3)


def _roll_sign():
    """Calibrate pltpu.roll's shift convention against jnp.roll (tiny one-off kernel).

    Returns +1 if pltpu.roll(x, k, axis)[i] == x[(i - k) % n] (jnp.roll
    convention), else -1.  The main kernel only needs shifted[:, p] = a[:, p+s],
    so the convention is folded into the shift amount.
    """
    def k(x_ref, o_ref):
        o_ref[...] = pltpu.roll(x_ref[...], shift=1, axis=1)

    x = jnp.arange(8 * 128, dtype=jnp.float32).reshape(8, 128)
    y = jax.device_get(
        pl.pallas_call(k, out_shape=jax.ShapeDtypeStruct((8, 128), jnp.float32))(x))
    return 1 if float(y[0, 0]) == float(x[0, 127]) else -1


def make_srdb_kernel(W, L, C, roll_sign):
    """Fused SRDB kernel on compact (C, L=H*W) frames with per-tap masks."""
    slope = 0.1
    NT1 = len(TAPS25) * C                       # 25*C stage-1 stack rows
    NT2 = C + len(TAPS9) * C + len(TAPS25) * C + C   # 36*C stage-2 stack rows

    def shift(a, s):
        # shifted[:, p] = a[:, (p + s) mod L]; wraps only hit masked positions.
        if s == 0:
            return a
        amt = (-s if roll_sign == 1 else s) % L
        return pltpu.roll(a, shift=amt, axis=1)

    def kernel(mask_ref, x_ref, w1h_ref, w1l_ref, w2h_ref, w2l_ref, o_ref, stk_ref):
        x = x_ref[0]                                       # (C, L) f32

        def tap(act, t_idx, dh, dw):
            """Shifted copy of `act` emulating zero-padded conv reads for tap (dh,dw)."""
            v = shift(act, dh * W + dw)
            if (dh, dw) != (0, 0):
                v = v * mask_ref[t_idx:t_idx + 1, :]       # (1,L) lane mask, bcast over C
            return v

        def dot3(wh_ref, wl_ref, stk_f32):
            """f32-quality matmul as 3 native bf16 MXU passes (manual bf16_3x)."""
            wh = wh_ref[...]
            wl = wl_ref[...]
            hi = stk_f32.astype(jnp.bfloat16)
            lo = (stk_f32 - hi.astype(jnp.float32)).astype(jnp.bfloat16)
            d = lambda a, b: jnp.dot(a, b, preferred_element_type=jnp.float32)
            return d(wh, hi) + d(wl, hi) + d(wh, lo)

        # ---- stage 1: one matmul computes conv1 | conv2 | conv3 -------------
        for t, (dh, dw) in enumerate(TAPS25):
            stk_ref[C * t:C * (t + 1), :] = tap(x, t, dh, dw)
        y = dot3(w1h_ref, w1l_ref, stk_ref[0:NT1, :])      # (3C, L)
        y = jnp.where(y > 0, y, slope * y)                 # LeakyReLU(0.1) on x1|x2|x3
        x1, x2, x3 = y[0:C], y[C:2 * C], y[2 * C:3 * C]
        x11 = x1 + x3
        x22 = x11 + x2                                     # == x_1 + x_3 + x_2
        x33 = x2 + x3

        # ---- stage 2: one matmul computes conv6(conv11(x11)+conv22(x22)+conv33(x33)+x)
        stk_ref[0:C, :] = x11                              # 1x1 tap, no mask needed
        for j, (dh, dw) in enumerate(TAPS9):
            t = (dh + 2) * 5 + (dw + 2)                    # matching 5x5 tap-mask row
            stk_ref[C * (1 + j):C * (2 + j), :] = tap(x22, t, dh, dw)
        base = C * (1 + len(TAPS9))
        for t, (dh, dw) in enumerate(TAPS25):
            stk_ref[base + C * t:base + C * (t + 1), :] = tap(x33, t, dh, dw)
        stk_ref[NT2 - C:NT2, :] = x                        # identity-folded "+ x" inside x_0

        out = dot3(w2h_ref, w2l_ref, stk_ref[...]) + x     # conv6(x_0) + x residual
        o_ref[0] = out.astype(o_ref.dtype)

    return kernel


def _place_taps(w, taps):
    """OIHW conv weight -> (Co, Ci*len(taps)), tap-major / Ci-minor columns.

    Taps outside the KxK footprint get zero blocks (used to zero-place conv1 /
    conv2 inside the fused 25-tap layout)."""
    co, ci, k, _ = w.shape
    p = (k - 1) // 2
    blocks = []
    for dh, dw in taps:
        if abs(dh) <= p and abs(dw) <= p:
            blocks.append(w[:, :, dh + p, dw + p])
        else:
            blocks.append(jnp.zeros((co, ci), w.dtype))
    return jnp.concatenate(blocks, axis=1)


def _split_bf16(w):
    hi = w.astype(jnp.bfloat16)
    lo = (w - hi.astype(jnp.float32)).astype(jnp.bfloat16)
    return hi, lo


@functools.partial(jax.jit, static_argnames=("roll_sign",))
def srdb_pallas(x_nchw, w1, w2, w3, w11, w22, w33, w6, *, roll_sign):
    N, C, H, W = x_nchw.shape
    L = H * W                                  # 256 for the test: lane-dense, 2 vregs/row
    NT2 = 36 * C

    # Compact flat frames: a pure metadata reshape, no HBM pad/crop passes.
    x_flat = x_nchw.reshape(N, C, L)

    # Per-tap validity masks (1 where the tap source pixel is inside the image).
    hh = jnp.arange(H, dtype=jnp.int32)[:, None]
    ww = jnp.arange(W, dtype=jnp.int32)[None, :]
    rows = []
    for dh, dw in TAPS25:
        ok = (hh + dh >= 0) & (hh + dh < H) & (ww + dw >= 0) & (ww + dw < W)
        rows.append(ok.astype(jnp.float32).reshape(1, L))
    mask = jnp.concatenate(rows, axis=0)                    # (25, L)
    mask = jnp.pad(mask, ((0, 32 - len(TAPS25)), (0, 0)))   # sublane-aligned rows

    # Fused stage-1 weight: rows = [conv1 | conv2 | conv3], columns = 25 taps x C.
    W1f = jnp.concatenate([_place_taps(w1, TAPS25),
                           _place_taps(w2, TAPS25),
                           _place_taps(w3, TAPS25)], axis=0)            # (3C, 25C)
    # Fused stage-2 weight: conv6 pre-multiplied into [w11 | w22 | w33 | I].
    hp = functools.partial(jnp.dot, precision=lax.Precision.HIGHEST)
    w6m = w6[:, :, 0, 0]
    W2f = jnp.concatenate([hp(w6m, w11[:, :, 0, 0]),
                           hp(w6m, _place_taps(w22, TAPS9)),
                           hp(w6m, _place_taps(w33, TAPS25)),
                           w6m], axis=1)                                # (C, 36C)
    w1h, w1l = _split_bf16(W1f)
    w2h, w2l = _split_bf16(W2f)

    cost = pl.CostEstimate(
        flops=2 * N * L * int(W1f.shape[0] * W1f.shape[1] + W2f.shape[0] * W2f.shape[1]),
        transcendentals=0,
        bytes_accessed=int(4 * (2 * x_flat.size + mask.size)
                           + 2 * 2 * (W1f.size + W2f.size)),
    )

    out_flat = pl.pallas_call(
        make_srdb_kernel(W, L, C, roll_sign),
        out_shape=jax.ShapeDtypeStruct((N, C, L), x_nchw.dtype),
        grid=(N,),
        in_specs=[
            pl.BlockSpec(mask.shape, lambda b: (0, 0)),       # per-tap masks (VMEM-resident)
            pl.BlockSpec((1, C, L), lambda b: (b, 0, 0)),     # one image per grid step
            pl.BlockSpec(w1h.shape, lambda b: (0, 0)),        # fused stage-1 weight hi/lo
            pl.BlockSpec(w1l.shape, lambda b: (0, 0)),
            pl.BlockSpec(w2h.shape, lambda b: (0, 0)),        # fused stage-2 weight hi/lo
            pl.BlockSpec(w2l.shape, lambda b: (0, 0)),
        ],
        out_specs=pl.BlockSpec((1, C, L), lambda b: (b, 0, 0)),
        scratch_shapes=[pltpu.VMEM((NT2, L), jnp.float32)],   # persistent tap stack
        compiler_params=pltpu.CompilerParams(
            dimension_semantics=("parallel",),                # v7x: 2 TCs split the batch
            vmem_limit_bytes=32 * 1024 * 1024,
        ),
        cost_estimate=cost,
    )(mask, x_flat, w1h, w1l, w2h, w2l)

    return out_flat.reshape(N, C, H, W)


def srdb_reference(x, w1, w2, w3, w11, w22, w33, w6):
    """Pure-JAX SRDB forward in NCHW matching the PyTorch module (no biases)."""
    def conv(a, w, pad):
        dn = lax.conv_dimension_numbers(a.shape, w.shape, ("NCHW", "OIHW", "NCHW"))
        return lax.conv_general_dilated(
            a, w, window_strides=(1, 1),
            padding=[(pad, pad), (pad, pad)],
            dimension_numbers=dn, precision=lax.Precision.HIGHEST)

    leaky = lambda v: jnp.where(v > 0, v, 0.1 * v)
    x1 = leaky(conv(x, w1, 0))
    x2 = leaky(conv(x, w2, 1))
    x3 = leaky(conv(x, w3, 2))
    x11 = x1 + x3
    x22 = x1 + x3 + x2
    x33 = x2 + x3
    x111 = conv(x11, w11, 0)
    x222 = conv(x22, w22, 1)
    x333 = conv(x33, w33, 2)
    x0 = x111 + x + x222 + x333
    return conv(x0, w6, 0) + x


if __name__ == "__main__":
    # SRDB's forward requires growthRate == nChannels (residual adds), so use
    # nChannels = growthRate = 32 at a small 2x32x16x16 input.
    N, C, H, W = 2, 32, 16, 16

    key = jax.random.PRNGKey(0)
    keys = jax.random.split(key, 8)
    x = jax.random.normal(keys[0], (N, C, H, W), jnp.float32)

    def conv_w(k, ks):
        return jax.random.normal(k, (C, C, ks, ks), jnp.float32) * 0.1

    w1 = conv_w(keys[1], 1)    # conv1  1x1
    w2 = conv_w(keys[2], 3)    # conv2  3x3
    w3 = conv_w(keys[3], 5)    # conv3  5x5
    w11 = conv_w(keys[4], 1)   # conv11 1x1
    w22 = conv_w(keys[5], 3)   # conv22 3x3
    w33 = conv_w(keys[6], 5)   # conv33 5x5
    w6 = conv_w(keys[7], 1)    # conv6  1x1

    sign = _roll_sign()
    out = srdb_pallas(x, w1, w2, w3, w11, w22, w33, w6, roll_sign=sign)
    out = jax.block_until_ready(out)

    ref = srdb_reference(x, w1, w2, w3, w11, w22, w33, w6)
    assert out.shape == ref.shape == (N, C, H, W)
    max_err = float(jnp.max(jnp.abs(out - ref)))
    assert jnp.allclose(out, ref, atol=5e-3, rtol=5e-3), f"mismatch vs reference: {max_err}"

    print("KERNEL_OK")
</pallas_src>

<mosaic_0001>
module attributes {stable_mosaic.version = 11 : i64} {
  func.func @k(%arg0: memref<8x128xf32, #tpu.memory_space<vmem>>, %arg1: memref<8x128xf32, #tpu.memory_space<vmem>>) attributes {dimension_semantics = [], scalar_prefetch = 0 : i64, scratch_operands = 0 : i64, tpu.core_type = #tpu.core_type<tc>} {
    %c0 = arith.constant 0 : index
    %c0_0 = arith.constant 0 : index
    %0 = vector.load %arg0[%c0, %c0_0] : memref<8x128xf32, #tpu.memory_space<vmem>>, vector<8x128xf32>
    %c1_i32 = arith.constant 1 : i32
    %1 = tpu.dynamic_rotate %0 by %c1_i32 dim 1 : vector<8x128xf32>, i32 -> vector<8x128xf32>
    %c0_1 = arith.constant 0 : index
    %c0_2 = arith.constant 0 : index
    %2 = vector.load %arg1[%c0_1, %c0_2] : memref<8x128xf32, #tpu.memory_space<vmem>>, vector<8x128xf32>
    tpu.vector_store %arg1[%c0_1, %c0_2], %1 {strides = array<i32>} : memref<8x128xf32, #tpu.memory_space<vmem>>, vector<8x128xf32>,
    return
  }
}

</mosaic_0001>

<llo_original>
// kernel: tpu_custom_call.1
$region0: #{tpu_custom_call.1}
  #allocation0 [shape = 'u32[]', space=smem, size = 0x4, offset = 0x4, fixed_abs, tag = 'smem constant byte address 0x4 - core index']
  #allocation1 [shape = 'u32[144,128]{1,0:T(1,128)}', space=vmem, size = 0x12000, scoped, tag = 'internal scratch']
  %s0 = inlined_call_operand.hbm [shape: f32[8,128], index: 0, kind: input, shape index: {}]
  %s1 = inlined_call_operand.hbm [shape: f32[8,128], index: 1, kind: output, shape index: {}]
  %s2 = sld [smem:[#allocation0]]
  $region18: #{tpu_custom_call.1} parent=0
    _
  %s4 = ssub.s32 1, %s2
  %s5 = scalar_select 0, %s4, %s2
  $region1: #{tpu_custom_call.1} parent=0
    #allocation2 [shape = 'u8[4096]{0}', space=vmem, size = 0x1000, scoped, tag = 'input window, operand 0, single buffered']
    #allocation3 [shape = 's32[1]{0}', space=sflag, size = 0x4, scoped, tag = 'scoped memory for tpu_custom_call.1']
    #allocation4 [shape = 's32[1]{0}', space=sflag, size = 0x4, scoped, tag = 'scoped memory for tpu_custom_call.1']
    #allocation5 [shape = 'u8[4096]{0}', space=vmem, size = 0x1000, scoped, tag = 'output window, operand 0, single buffered']
    %6 = vsyncpa [#allocation3], 0
    %7 = vsyncpa [#allocation4], 0
    // Predicated region
    $region2: #{tpu_custom_call.1} parent=1 // pred_check
      _
    $region3: #{tpu_custom_call.1} parent=1 // pred_check_branch
      %9 = sbr.rel (0) target = $region5
    $region4: #{tpu_custom_call.1} parent=1 // pred_region
      %s11 = ssub.s32 128, 128
      %12 = vsyncadd [#allocation3], %s11
      %s14 = sshll.u32 [#allocation2], 4
      %s15 = int_to_ptr.vmem [resolvable:$true] %s14
      %17 = dma.hbm_to_vmem [thread:$0]  %s0, 128, %s15, [#allocation3]
    $region5: #{tpu_custom_call.1} parent=1 // pred_fallthru
      _
    // Predicated region
    $region6: #{tpu_custom_call.1} parent=1 // pred_check
      _
    $region7: #{tpu_custom_call.1} parent=1 // pred_check_branch
      %19 = sbr.rel (0) target = $region9
    $region8: #{tpu_custom_call.1} parent=1 // pred_region
      %20 = dma.done [#allocation3], 128
    $region9: #{tpu_custom_call.1} parent=1 // pred_fallthru
      _
    %v21 = vld [vmem:[#allocation2] sm:$0xff]
    %22 = vrot.lane.b32.xlu0 %v21, 1
    %v23 = vpop.permute.xlu0 %22
    %24 = vst [vmem:[#allocation5] sm:$0xff] %v23
    // Predicated region
    $region10: #{tpu_custom_call.1} parent=1 // pred_check
      _
    $region11: #{tpu_custom_call.1} parent=1 // pred_check_branch
      %26 = sbr.rel (0) target = $region13
    $region12: #{tpu_custom_call.1} parent=1 // pred_region
      %s28 = ssub.s32 128, 128
      %29 = vsyncadd [#allocation4], %s28
      %s31 = sshll.u32 [#allocation5], 4
      %s32 = int_to_ptr.vmem [resolvable:$true] %s31
      %34 = dma.vmem_to_hbm [thread:$0]  %s32, 128, %s1, [#allocation4]
    $region13: #{tpu_custom_call.1} parent=1 // pred_fallthru
      _
    // Predicated region
    $region14: #{tpu_custom_call.1} parent=1 // pred_check
      _
    $region15: #{tpu_custom_call.1} parent=1 // pred_check_branch
      %36 = sbr.rel (0) target = $region17
    $region16: #{tpu_custom_call.1} parent=1 // pred_region
      %37 = dma.done [#allocation4], 128
    $region17: #{tpu_custom_call.1} parent=1 // pred_fallthru
      _
    %38 = vsyncpa [#allocation3], 1
    %39 = vsyncpa [#allocation4], 1

</llo_original>
